<compile_context>
chip_gen: v6e
topology: v6e:2x2x1
jax: 0.10.0
libtpu: 0.0.40
codegen_flags: <defaults>
</compile_context>

<pallas_src>
import math
from functools import partial

import jax
import jax.numpy as jnp
from jax.experimental import pallas as pl
from jax.experimental.pallas import tpu as pltpu

_LANE = 128
_SUBLANE = 8


def _apply_kernel_bias(h_ref, b_ref, o_ref, *, relu):
    h = h_ref[...].astype(jnp.float32)          # (tile_rows, lane)
    b = b_ref[...].astype(jnp.float32)          # (1, lane) -- resident across steps
    out = h + b
    if relu:
        out = jnp.maximum(out, 0.0)
    o_ref[...] = out.astype(o_ref.dtype)


def _apply_kernel_nobias(h_ref, o_ref, *, relu):
    h = h_ref[...].astype(jnp.float32)
    out = jnp.maximum(h, 0.0) if relu else h
    o_ref[...] = out.astype(o_ref.dtype)


def _choose_tile_rows(rows, lane, itemsize, target_block_bytes=2 << 20):
    """Row tile sized to ~2 MiB per block (double-buffered in+out stays ~8 MiB
    of VMEM -> safe on all chips), split into >=2 blocks when possible so the
    'parallel' grid axis can shard across v7x's two TensorCores."""
    if rows <= _SUBLANE:
        return rows
    t = max(_SUBLANE, min(target_block_bytes // (lane * itemsize), rows))
    t = (t // _SUBLANE) * _SUBLANE              # sublane-aligned
    if t >= rows and rows >= 2 * _SUBLANE:
        t = ((rows // 2 + _SUBLANE - 1) // _SUBLANE) * _SUBLANE
    return max(t, _SUBLANE)


def node_apply(h, bias=None, *, activation="relu", tile_rows=None):
    """NodeApplyModule.forward on node features h (N, F):
         h <- activation(h + bias)   (bias optional, activation in {None,'relu'})."""
    # TODO(synk): in a full GNN layer this bias+activation should be fused into
    # the epilogue of the producing Linear matmul kernel; standalone it costs
    # one extra HBM read + write of N*F.
    if bias is None and activation is None:
        return h

    N, F = h.shape
    orig_shape = h.shape
    relu = activation == "relu"

    # Lane-dense repack when F < 128 and nodes fold evenly into 128-wide rows.
    if F < _LANE and _LANE % F == 0 and (N * F) % _LANE == 0:
        lane = _LANE
        h2d = h.reshape(N * F // _LANE, _LANE)
        bias_row = None
        if bias is not None:
            bias_row = jnp.tile(bias, _LANE // F).reshape(1, _LANE).astype(h.dtype)
    else:
        lane = F
        h2d = h
        bias_row = None if bias is None else bias.reshape(1, F).astype(h.dtype)

    rows = h2d.shape[0]
    if tile_rows is None:
        tile_rows = _choose_tile_rows(rows, lane, h2d.dtype.itemsize)
    tile_rows = min(tile_rows, rows)

    grid = (pl.cdiv(rows, tile_rows),)
    hspec = pl.BlockSpec((tile_rows, lane), lambda i: (i, 0))

    if bias_row is not None:
        kernel = partial(_apply_kernel_bias, relu=relu)
        in_specs = [hspec,
                    # constant index_map -> bias block stays resident, no per-step DMA
                    pl.BlockSpec((1, lane), lambda i: (0, 0))]
        args = (h2d, bias_row)
    else:
        kernel = partial(_apply_kernel_nobias, relu=relu)
        in_specs = [hspec]
        args = (h2d,)

    out2d = pl.pallas_call(
        kernel,
        out_shape=jax.ShapeDtypeStruct((rows, lane), h.dtype),
        grid_spec=pl.GridSpec(
            grid=grid,
            in_specs=in_specs,
            out_specs=pl.BlockSpec((tile_rows, lane), lambda i: (i, 0)),
        ),
        # pure in-place node-feature update: reuse h's HBM buffer
        input_output_aliases={0: 0},
        compiler_params=pltpu.CompilerParams(
            dimension_semantics=("parallel",),
        ),
    )(*args)

    return out2d.reshape(orig_shape)


if __name__ == "__main__":
    # Shapes implied by the module: nodes.data['h'] -> (num_nodes, out_feats)
    num_nodes = 8
    out_feats = 32

    key = jax.random.PRNGKey(0)
    k_h, k_b = jax.random.split(key)

    h = jax.random.normal(k_h, (num_nodes, out_feats), dtype=jnp.float32)

    # reset_parameters(): bias ~ U(-stdv, stdv), stdv = 1/sqrt(out_feats)
    stdv = 1.0 / math.sqrt(out_feats)
    bias = jax.random.uniform(
        k_b, (out_feats,), dtype=jnp.float32, minval=-stdv, maxval=stdv
    )

    # reference (plain JAX): bias add + ReLU
    ref = jnp.maximum(h + bias[None, :], 0.0)

    out = node_apply(h, bias, activation="relu")
    out = jax.block_until_ready(out)

    assert out.shape == h.shape and out.dtype == h.dtype
    assert jnp.allclose(out, ref, atol=1e-6), "mismatch vs reference"

    # also exercise the no-bias / no-activation paths for module parity
    out_nb = jax.block_until_ready(node_apply(h, None, activation="relu"))
    assert jnp.allclose(out_nb, jnp.maximum(h, 0.0), atol=1e-6)
    out_na = jax.block_until_ready(node_apply(h, bias, activation=None))
    assert jnp.allclose(out_na, h + bias[None, :], atol=1e-6)

    print("KERNEL_OK")
</pallas_src>

<mosaic_0001>
module attributes {stable_mosaic.version = 11 : i64} {
  func.func @_apply_kernel_bias(%arg0: i32, %arg1: memref<2x128xf32, #tpu.memory_space<vmem>>, %arg2: memref<1x128xf32, #tpu.memory_space<vmem>>, %arg3: memref<2x128xf32, #tpu.memory_space<vmem>>) attributes {dimension_semantics = [#tpu.dimension_semantics<parallel>], iteration_bounds = array<i64: 1>, scalar_prefetch = 0 : i64, scratch_operands = 0 : i64, tpu.core_type = #tpu.core_type<tc>, window_params = [{transform_indices = @transform_0, window_bounds = array<i64: 2, 128>}, {pipeline_mode = #tpu.pipeline_mode<synchronous>, transform_indices = @transform_1, window_bounds = array<i64: 1, 128>}, {transform_indices = @transform_2, window_bounds = array<i64: 2, 128>}]} {
    %c0 = arith.constant 0 : index
    %c0_0 = arith.constant 0 : index
    %0 = vector.load %arg1[%c0, %c0_0] : memref<2x128xf32, #tpu.memory_space<vmem>>, vector<2x128xf32>
    %c0_1 = arith.constant 0 : index
    %c0_2 = arith.constant 0 : index
    %1 = vector.load %arg2[%c0_1, %c0_2] : memref<1x128xf32, #tpu.memory_space<vmem>>, vector<1x128xf32>
    %2 = vector.broadcast %1 : vector<1x128xf32> to vector<2x128xf32>
    %3 = arith.addf %0, %2 : vector<2x128xf32>
    %cst = arith.constant 0.000000e+00 : f32
    %4 = vector.broadcast %cst : f32 to vector<2x128xf32>
    %5 = arith.maximumf %3, %4 : vector<2x128xf32>
    %c0_3 = arith.constant 0 : index
    %c0_4 = arith.constant 0 : index
    %6 = vector.load %arg3[%c0_3, %c0_4] : memref<2x128xf32, #tpu.memory_space<vmem>>, vector<2x128xf32>
    tpu.vector_store %arg3[%c0_3, %c0_4], %5 {strides = array<i32>} : memref<2x128xf32, #tpu.memory_space<vmem>>, vector<2x128xf32>,
    return
  }
  func.func @transform_0(%arg0: i32) -> (i32, i32) {
    %c0_i32 = arith.constant 0 : i32
    %c0_i32_0 = arith.constant 0 : i32
    return %arg0, %c0_i32 : i32, i32
  }
  func.func @transform_1(%arg0: i32) -> (i32, i32) {
    %c0_i32 = arith.constant 0 : i32
    %c0_i32_0 = arith.constant 0 : i32
    %c0_i32_1 = arith.constant 0 : i32
    return %c0_i32, %c0_i32_0 : i32, i32
  }
  func.func @transform_2(%arg0: i32) -> (i32, i32) {
    %c0_i32 = arith.constant 0 : i32
    %c0_i32_0 = arith.constant 0 : i32
    return %arg0, %c0_i32 : i32, i32
  }
}

</mosaic_0001>

<llo_original>
// kernel: tpu_custom_call.1
$region0: #{tpu_custom_call.1}
  #allocation0 [shape = 'u32[]', space=smem, size = 0x4, offset = 0x4, fixed_abs, tag = 'smem constant byte address 0x4 - core index']
  #allocation1 [shape = 'u32[144,128]{1,0:T(1,128)}', space=vmem, size = 0x12000, scoped, tag = 'internal scratch']
  %s0 = inlined_call_operand.hbm [shape: f32[2,128], index: 0, kind: input, shape index: {}, may-alias: {0,2}]
  %s1 = inlined_call_operand.vmem [shape: f32[1,128], index: 1, kind: input, shape index: {}]
  %s2 = inlined_call_operand.hbm [shape: f32[2,128], index: 2, kind: output, shape index: {}, may-alias: {0,2}]
  %s3 = sld [smem:[#allocation0]]
  $region22: #{tpu_custom_call.1} parent=0
    _
  %s5 = ssub.s32 1, %s3
  %s6 = scalar_select 0, %s5, %s3
  $region1: #{tpu_custom_call.1} parent=0
    #allocation2 [shape = 'u8[1024]{0}', space=vmem, size = 0x400, scoped, tag = 'input window, operand 0, single buffered']
    #allocation3 [shape = 's32[1]{0}', space=sflag, size = 0x4, scoped, tag = 'scoped memory for tpu_custom_call.1']
    #allocation4 [shape = 's32[1]{0}', space=sflag, size = 0x4, scoped, tag = 'scoped memory for tpu_custom_call.1']
    #allocation5 [shape = 'u8[1024]{0}', space=vmem, size = 0x400, scoped, tag = 'output window, operand 0, single buffered']
    %7 = vsyncpa [#allocation3], 0
    %8 = vsyncpa [#allocation4], 0
    // Predicated region
    $region2: #{tpu_custom_call.1} parent=1 // pred_check
      _
    $region3: #{tpu_custom_call.1} parent=1 // pred_check_branch
      %10 = sbr.rel (0) target = $region5
    $region4: #{tpu_custom_call.1} parent=1 // pred_region
      %s12 = ssub.s32 32, 32
      %13 = vsyncadd [#allocation3], %s12
      %s15 = sshll.u32 [#allocation2], 4
      %s16 = int_to_ptr.vmem [resolvable:$true] %s15
      %18 = dma.hbm_to_vmem [thread:$0]  %s0, 32, %s16, [#allocation3]
    $region5: #{tpu_custom_call.1} parent=1 // pred_fallthru
      _
    // Predicated region
    $region6: #{tpu_custom_call.1} parent=1 // pred_check
      _
    $region7: #{tpu_custom_call.1} parent=1 // pred_check_branch
      %20 = sbr.rel (0) target = $region9
    $region8: #{tpu_custom_call.1} parent=1 // pred_region
      _
    $region9: #{tpu_custom_call.1} parent=1 // pred_fallthru
      _
    // Predicated region
    $region10: #{tpu_custom_call.1} parent=1 // pred_check
      _
    $region11: #{tpu_custom_call.1} parent=1 // pred_check_branch
      %22 = sbr.rel (0) target = $region13
    $region12: #{tpu_custom_call.1} parent=1 // pred_region
      %23 = dma.done [#allocation3], 32
    $region13: #{tpu_custom_call.1} parent=1 // pred_fallthru
      _
    %v24 = vld [vmem:[#allocation2] sm:$0x3]
    %v25 = vld [vmem:[%s1] sm:$0x1]
    %v27 = vlaneseq
    %v28 = vshrl.u32 %v27, 7
    %v29 = vsub.s32 0, %v28
    %v30 = vrot.slane %v25, %v29
    %v32 = vadd.f32 %v24, %v30
    %v33 = vmax.f32 %v32, 0.0
    %34 = vst [vmem:[#allocation5] sm:$0x3] %v33
    // Predicated region
    $region14: #{tpu_custom_call.1} parent=1 // pred_check
      _
    $region15: #{tpu_custom_call.1} parent=1 // pred_check_branch
      %36 = sbr.rel (0) target = $region17
    $region16: #{tpu_custom_call.1} parent=1 // pred_region
      %s38 = ssub.s32 32, 32
      %39 = vsyncadd [#allocation4], %s38
      %s41 = sshll.u32 [#allocation5], 4
      %s42 = int_to_ptr.vmem [resolvable:$true] %s41
      %44 = dma.vmem_to_hbm [thread:$0]  %s42, 32, %s2, [#allocation4]
    $region17: #{tpu_custom_call.1} parent=1 // pred_fallthru
      _
    // Predicated region
    $region18: #{tpu_custom_call.1} parent=1 // pred_check
      _
    $region19: #{tpu_custom_call.1} parent=1 // pred_check_branch
      %46 = sbr.rel (0) target = $region21
    $region20: #{tpu_custom_call.1} parent=1 // pred_region
      %47 = dma.done [#allocation4], 32
    $region21: #{tpu_custom_call.1} parent=1 // pred_fallthru
      _
    %48 = vsyncpa [#allocation3], 1
    %49 = vsyncpa [#allocation4], 1

</llo_original>
